<compile_context>
chip_gen: v7x
topology: tpu7x:2x2x1
jax: 0.10.0
libtpu: 0.0.40
codegen_flags: <defaults>
</compile_context>

<pallas_src>
import jax
import jax.numpy as jnp
from jax.experimental import pallas as pl
from jax.experimental.pallas import tpu as pltpu

# ['EDA_WordDelete','EDA_WordSwap','EDA_WordDelete_Swap','Cbert','BackTrans',
#  'RandomMask','R3F','Cutoff'] -> 8 operations
NUM_OPS = 8
LANES = 128                  # TPU lane width: keep last dim lane-dense (no vst.msk)
TARGET_TILE_BYTES = 2 << 20  # 2 MiB/block; 2 bufs x (in+out) = 8 MiB resident,
                             # fits v5e(16)/v6e(32)/v7x(32) default scoped VMEM.


def scale_kernel(onehot_smem, x_ref, o_ref):
    """out tile = in tile * sum_k(one_hot[k]).

    The op-axis reduction of (emb.unsqueeze(0) * one_hot.view(-1,1,1,1)) collapses
    to a scalar scale because every stand-in op is the identity.

    onehot_smem : SMEM (NUM_OPS,) f32  -- scalar-prefetched hard one-hot
    x_ref/o_ref : (tile_rows, 128) VMEM tiles (lane-dense, pipelined by BlockSpec)
    """
    scale = onehot_smem[0]
    for k in range(1, NUM_OPS):          # 7 scalar-unit adds: fully hidden
        scale = scale + onehot_smem[k]
    o_ref[...] = x_ref[...] * scale.astype(o_ref.dtype)


def _scale_emb_tiled(input_emb, onehot, *, in_place=False, core_parallel=None):
    """(emb.unsqueeze(0) * one_hot.view(-1,1,1,1)).sum(0) as a tiled scalar scale."""
    orig_shape = input_emb.shape
    dtype = input_emb.dtype
    itemsize = jnp.dtype(dtype).itemsize
    # dtype-aware min sublane pack: 8 for f32, 16 for bf16, 32 for int8/fp8
    row_target = TARGET_TILE_BYTES // (LANES * itemsize)   # multiple of sublane pack

    flat = input_emb.reshape(-1)          # free (bitcast) for contiguous data
    total = flat.shape[0]
    rows = pl.cdiv(total, LANES)
    needs_pad = rows * LANES != total
    if needs_pad:
        # Fallback only when numel isn't lane-aligned (extra HBM copy for the pad
        # and one more for the trailing slice).
        flat = jnp.pad(flat, (0, rows * LANES - total))
    x2d = flat.reshape(rows, LANES)

    if rows <= row_target:
        tile_rows = rows                  # single block == full array dims
                                          # (legal even if rows % sublanes != 0)
    else:
        tile_rows = row_target            # sublane-aligned; Pallas masks the
                                          # ragged trailing block itself
    grid = pl.cdiv(rows, tile_rows)

    # Shard the row grid across the two TensorCores on v7x; plain "parallel"
    # elsewhere (v5e/v6e are single-TC, semantics don't change codegen there).
    if core_parallel is None:
        core_parallel = "v7" in jax.devices()[0].device_kind.lower()
    semantics = (pltpu.CORE_PARALLEL,) if (core_parallel and grid > 1) else ("parallel",)

    out2d = pl.pallas_call(
        scale_kernel,
        out_shape=jax.ShapeDtypeStruct((rows, LANES), dtype),
        grid_spec=pltpu.PrefetchScalarGridSpec(
            num_scalar_prefetch=1,        # one-hot (8 f32) lands in SMEM
            grid=(grid,),
            in_specs=[pl.BlockSpec((tile_rows, LANES), lambda i, oh: (i, 0))],
            out_specs=pl.BlockSpec((tile_rows, LANES), lambda i, oh: (i, 0)),
        ),
        compiler_params=pltpu.CompilerParams(dimension_semantics=semantics),
        cost_estimate=pl.CostEstimate(flops=total, transcendentals=0,
                                      bytes_accessed=2 * total * itemsize),
        # Write out_emb in place when the caller donates input_emb
        # (operand 0 is the scalar-prefetch one-hot, operand 1 the emb slab).
        input_output_aliases=({1: 0} if in_place else {}),
    )(onehot.astype(jnp.float32), x2d)

    out_flat = out2d.reshape(-1)
    if needs_pad:
        out_flat = out_flat[:total]
    return out_flat.reshape(orig_shape)


def autoaug_policy_forward(weights, gumbel, input_ids, input_emb, temperature,
                           *, materialize_reduce=False, in_place=False):
    """JAX wrapper mirroring AutoAugPolicy.forward (training branch)."""
    # (weights + gumbel) / tau and the hard one-hot: 8 scalars of plain jnp,
    # fused by XLA into one tiny op (no (1,8) pallas_call, no extra reduce op).
    logits = ((weights + gumbel) / jnp.float32(temperature)).astype(jnp.float32)
    idx = jnp.argmax(logits)              # == argmax(softmax(logits)); first-max
                                          # tie-break, matching torch argmax
    onehot = (jnp.arange(NUM_OPS, dtype=jnp.int32) == idx).astype(jnp.float32)

    if materialize_reduce:
        # Faithful tiled materialization of the op-axis broadcast-multiply-sum
        # (only needed if e.g. a custom_vjp wants the multiply as a residual).
        out_emb = _scale_emb_tiled(input_emb, onehot, in_place=in_place)
    else:
        # DEFAULT fast path: sum(one_hot) == 1.0 exactly, so the reduction is a
        # bit-exact identity -> skip the O(B*S*H) HBM read+write entirely.
        out_emb = input_emb

    # TODO(synk): the selected augmentation op (EDA_*, Cbert, BackTrans, RandomMask,
    # R3F, Cutoff) requires a tokenizer/model and mutates input_ids/input_emb; the
    # identity op stands in here, so input_ids pass through unchanged.
    # TODO(synk): JSON op-record IO (create/update_op_records), the torch.randint
    # fallback when weights.mean()==1, and the eval-branch Categorical sampling are
    # host-side control flow and are not implemented in-kernel.
    # TODO(synk): no custom_vjp is provided for the straight-through gradient of
    # F.gumbel_softmax(hard=True) w.r.t. the policy weights.
    return input_ids, out_emb, onehot


if __name__ == "__main__":
    key = jax.random.PRNGKey(0)
    B, S, H = 2, 8, 32
    temperature = 0.5

    # nn.Parameter(torch.ones(len(self.operations))) -> deterministic init
    weights = jnp.ones((NUM_OPS,), jnp.float32)

    k_emb, k_ids, k_g = jax.random.split(key, 3)
    input_emb = jax.random.normal(k_emb, (B, S, H), dtype=jnp.float32)
    input_ids = jax.random.randint(k_ids, (B, S), 0, 30522, dtype=jnp.int32)

    # gumbel noise for F.gumbel_softmax, generated deterministically in glue code
    u = jax.random.uniform(k_g, (NUM_OPS,), jnp.float32,
                           minval=1e-6, maxval=1.0 - 1e-6)
    gumbel = -jnp.log(-jnp.log(u))

    # Default fast path (identity: zero embedding HBM traffic).
    ids_fast, emb_fast, onehot_fast = autoaug_policy_forward(
        weights, gumbel, input_ids, input_emb, temperature)
    jax.block_until_ready((ids_fast, emb_fast, onehot_fast))

    # Materialized path (exercises the Pallas scale kernel; numel is 128-aligned,
    # so no pad/slice copies and a single full-dim block).
    ids_out, emb_out, onehot = autoaug_policy_forward(
        weights, gumbel, input_ids, input_emb, temperature,
        materialize_reduce=True)
    jax.block_until_ready((ids_out, emb_out, onehot))

    # Unaligned fallback path (numel % 128 != 0 -> pad + trailing slice).
    emb_odd = jax.random.normal(k_emb, (B, S, 30), dtype=jnp.float32)
    _, emb_odd_out, _ = autoaug_policy_forward(
        weights, gumbel, input_ids, emb_odd, temperature,
        materialize_reduce=True)
    jax.block_until_ready(emb_odd_out)

    # sanity: hard gumbel-softmax is a one-hot; the broadcast-sum reproduces input_emb
    assert float(jnp.sum(onehot)) == 1.0
    assert jnp.array_equal(onehot, onehot_fast)
    assert jnp.array_equal(emb_fast, input_emb)
    assert jnp.allclose(emb_out, input_emb)
    assert jnp.allclose(emb_odd_out, emb_odd)
    assert ids_out.shape == (B, S) and ids_fast.shape == (B, S)

    print("KERNEL_OK")
</pallas_src>

<mosaic_0001>
module attributes {stable_mosaic.version = 11 : i64} {
  func.func @scale_kernel(%arg0: i32, %arg1: memref<8xf32, #tpu.memory_space<smem>>, %arg2: memref<4x128xf32, #tpu.memory_space<vmem>>, %arg3: memref<4x128xf32, #tpu.memory_space<vmem>>) attributes {dimension_semantics = [#tpu.dimension_semantics<parallel>], iteration_bounds = array<i64: 1>, scalar_prefetch = 1 : i64, scratch_operands = 0 : i64, tpu.core_type = #tpu.core_type<tc>, window_params = [{transform_indices = @transform_0, window_bounds = array<i64: 4, 128>}, {transform_indices = @transform_1, window_bounds = array<i64: 4, 128>}]} {
    %c0 = arith.constant 0 : index
    %0 = memref.load %arg1[%c0] : memref<8xf32, #tpu.memory_space<smem>>
    %c1 = arith.constant 1 : index
    %1 = memref.load %arg1[%c1] : memref<8xf32, #tpu.memory_space<smem>>
    %2 = arith.addf %0, %1 : f32
    %c2 = arith.constant 2 : index
    %3 = memref.load %arg1[%c2] : memref<8xf32, #tpu.memory_space<smem>>
    %4 = arith.addf %2, %3 : f32
    %c3 = arith.constant 3 : index
    %5 = memref.load %arg1[%c3] : memref<8xf32, #tpu.memory_space<smem>>
    %6 = arith.addf %4, %5 : f32
    %c4 = arith.constant 4 : index
    %7 = memref.load %arg1[%c4] : memref<8xf32, #tpu.memory_space<smem>>
    %8 = arith.addf %6, %7 : f32
    %c5 = arith.constant 5 : index
    %9 = memref.load %arg1[%c5] : memref<8xf32, #tpu.memory_space<smem>>
    %10 = arith.addf %8, %9 : f32
    %c6 = arith.constant 6 : index
    %11 = memref.load %arg1[%c6] : memref<8xf32, #tpu.memory_space<smem>>
    %12 = arith.addf %10, %11 : f32
    %c7 = arith.constant 7 : index
    %13 = memref.load %arg1[%c7] : memref<8xf32, #tpu.memory_space<smem>>
    %14 = arith.addf %12, %13 : f32
    %c0_0 = arith.constant 0 : index
    %c0_1 = arith.constant 0 : index
    %15 = vector.load %arg2[%c0_0, %c0_1] : memref<4x128xf32, #tpu.memory_space<vmem>>, vector<4x128xf32>
    %16 = vector.broadcast %14 : f32 to vector<4x128xf32>
    %17 = arith.mulf %15, %16 : vector<4x128xf32>
    %c0_2 = arith.constant 0 : index
    %c0_3 = arith.constant 0 : index
    %18 = vector.load %arg3[%c0_2, %c0_3] : memref<4x128xf32, #tpu.memory_space<vmem>>, vector<4x128xf32>
    tpu.vector_store %arg3[%c0_2, %c0_3], %17 {strides = array<i32>} : memref<4x128xf32, #tpu.memory_space<vmem>>, vector<4x128xf32>,
    return
  }
  func.func @transform_0(%arg0: i32, %arg1: memref<8xf32, #tpu.memory_space<smem>>) -> (i32, i32) {
    %c0_i32 = arith.constant 0 : i32
    %c0_i32_0 = arith.constant 0 : i32
    return %arg0, %c0_i32 : i32, i32
  }
  func.func @transform_1(%arg0: i32, %arg1: memref<8xf32, #tpu.memory_space<smem>>) -> (i32, i32) {
    %c0_i32 = arith.constant 0 : i32
    %c0_i32_0 = arith.constant 0 : i32
    return %arg0, %c0_i32 : i32, i32
  }
}

</mosaic_0001>

<llo_original>
// kernel: tpu_custom_call.1
$region0: #{tpu_custom_call.1}
  #allocation0 [shape = 'u32[]', space=smem, size = 0x4, offset = 0x4, fixed_abs, tag = 'smem constant byte address 0x4 - core index']
  #allocation1 [shape = 'u32[144,128]{1,0:T(1,128)}', space=vmem, size = 0x12000, scoped, tag = 'internal scratch']
  #allocation2 [shape = 's32[1]{0}', space=sflag, size = 0x4, scoped, tag = 'scoped memory for tpu_custom_call.1']
  #allocation3 [shape = 'u8[512]{0}', space=smem, size = 0x200, scoped, tag = 'prefetched SMEM operand 0']
  %s0 = inlined_call_operand.hbm [shape: f32[8], index: 0, kind: input, shape index: {}]
  %s1 = inlined_call_operand.hbm [shape: f32[4,128], index: 1, kind: input, shape index: {}]
  %s2 = inlined_call_operand.hbm [shape: f32[4,128], index: 2, kind: output, shape index: {}]
  %s3 = sld [smem:[#allocation0]]
  $region18: #{tpu_custom_call.1} parent=0
    _
  %s5 = ssub.s32 1, %s3
  %s6 = scalar_select 0, %s5, %s3
  %8 = dma.hbm_to_smem %s0, 16, [#allocation3], [#allocation2]
  %9 = dma.done [#allocation2], 16
  %10 = sfence
  $region1: #{tpu_custom_call.1} parent=0
    #allocation4 [shape = 'u8[2048]{0}', space=vmem, size = 0x800, scoped, tag = 'input window, operand 1, single buffered']
    #allocation5 [shape = 's32[1]{0}', space=sflag, size = 0x4, scoped, tag = 'scoped memory for tpu_custom_call.1']
    #allocation6 [shape = 's32[1]{0}', space=sflag, size = 0x4, scoped, tag = 'scoped memory for tpu_custom_call.1']
    #allocation7 [shape = 'u8[2048]{0}', space=vmem, size = 0x800, scoped, tag = 'output window, operand 0, single buffered']
    %11 = vsyncpa [#allocation5], 0
    %12 = vsyncpa [#allocation6], 0
    // Predicated region
    $region2: #{tpu_custom_call.1} parent=1 // pred_check
      _
    $region3: #{tpu_custom_call.1} parent=1 // pred_check_branch
      %14 = sbr.rel (0) target = $region5
    $region4: #{tpu_custom_call.1} parent=1 // pred_region
      %s16 = ssub.s32 64, 64
      %17 = vsyncadd [#allocation5], %s16
      %s19 = sshll.u32 [#allocation4], 4
      %s20 = int_to_ptr.vmem [resolvable:$true] %s19
      %22 = dma.hbm_to_vmem [thread:$0]  %s1, 64, %s20, [#allocation5]
    $region5: #{tpu_custom_call.1} parent=1 // pred_fallthru
      _
    // Predicated region
    $region6: #{tpu_custom_call.1} parent=1 // pred_check
      _
    $region7: #{tpu_custom_call.1} parent=1 // pred_check_branch
      %24 = sbr.rel (0) target = $region9
    $region8: #{tpu_custom_call.1} parent=1 // pred_region
      %25 = dma.done [#allocation5], 64
    $region9: #{tpu_custom_call.1} parent=1 // pred_fallthru
      _
    %s26 = sld [smem:[#allocation3]]
    %s27 = sld [smem:[#allocation3 + $0x1]]
    %s28 = sadd.f32 %s26, %s27
    %s29 = sld [smem:[#allocation3 + $0x2]]
    %s30 = sadd.f32 %s28, %s29
    %s31 = sld [smem:[#allocation3 + $0x3]]
    %s32 = sadd.f32 %s30, %s31
    %s33 = sld [smem:[#allocation3 + $0x4]]
    %s34 = sadd.f32 %s32, %s33
    %s35 = sld [smem:[#allocation3 + $0x5]]
    %s36 = sadd.f32 %s34, %s35
    %s37 = sld [smem:[#allocation3 + $0x6]]
    %s38 = sadd.f32 %s36, %s37
    %s39 = sld [smem:[#allocation3 + $0x7]]
    %s40 = sadd.f32 %s38, %s39
    %v41 = vld [vmem:[#allocation4] sm:$0xf]
    %v42 = vstv %s40
    %v43 = vmul.f32 %v41, %v42
    %44 = vst [vmem:[#allocation7] sm:$0xf] %v43
    // Predicated region
    $region10: #{tpu_custom_call.1} parent=1 // pred_check
      _
    $region11: #{tpu_custom_call.1} parent=1 // pred_check_branch
      %46 = sbr.rel (0) target = $region13
    $region12: #{tpu_custom_call.1} parent=1 // pred_region
      %s48 = ssub.s32 64, 64
      %49 = vsyncadd [#allocation6], %s48
      %s51 = sshll.u32 [#allocation7], 4
      %s52 = int_to_ptr.vmem [resolvable:$true] %s51
      %54 = dma.vmem_to_hbm [thread:$0]  %s52, 64, %s2, [#allocation6]
    $region13: #{tpu_custom_call.1} parent=1 // pred_fallthru
      _
    // Predicated region
    $region14: #{tpu_custom_call.1} parent=1 // pred_check
      _
    $region15: #{tpu_custom_call.1} parent=1 // pred_check_branch
      %56 = sbr.rel (0) target = $region17
    $region16: #{tpu_custom_call.1} parent=1 // pred_region
      %57 = dma.done [#allocation6], 64
    $region17: #{tpu_custom_call.1} parent=1 // pred_fallthru
      _
    %58 = vsyncpa [#allocation5], 1
    %59 = vsyncpa [#allocation6], 1

</llo_original>
